<compile_context>
chip_gen: v7x
topology: tpu7x:2x2x1
jax: 0.10.0
libtpu: 0.0.40
codegen_flags: <defaults>
</compile_context>

<pallas_src>
import jax
import jax.numpy as jnp
from jax.experimental import pallas as pl
from jax.experimental.pallas import tpu as pltpu


def _round_up(n, m):
    return ((n + m - 1) // m) * m


# --------------------------------------------------------------------------
# Kernels
# --------------------------------------------------------------------------
def _residual_dense_kernel(x_ref, w_ref, b_ref, o_ref):
    """Full-width: o = x @ w + b + x.  Weight/bias resident across the M grid."""
    x = x_ref[...]                                           # (bm, D), feed dtype
    y = jnp.dot(x, w_ref[...], preferred_element_type=jnp.float32)   # MXU, f32 acc
    o_ref[...] = (y + b_ref[...] + x.astype(jnp.float32)).astype(o_ref.dtype)


def _residual_dense_ntile_kernel(x_ref, xres_ref, w_ref, b_ref, o_ref):
    """N-tiled: o[:, jn] = x @ w[:, jn] + b[jn] + x[:, jn]."""
    y = jnp.dot(x_ref[...], w_ref[...], preferred_element_type=jnp.float32)
    o_ref[...] = (y + b_ref[...] + xres_ref[...].astype(jnp.float32)
                  ).astype(o_ref.dtype)


# --------------------------------------------------------------------------
# Wrapper
# --------------------------------------------------------------------------
def residual_dense(x, w, b, *, mxu_dtype=None, out_dtype=None,
                   block_m=1024, block_n=None):
    """Residual(Linear)(x) = x @ w + b + x, fused in one Pallas kernel.

    x: (B, S, D); w: (D, D); b: (D,).
    mxu_dtype: dtype fed to the MXU *and* read from HBM for x/w (default:
      bfloat16 when x is float32).  Accumulation, bias and residual add are f32.
    out_dtype: output dtype (default x.dtype).
    """
    B, S, D = x.shape
    M = B * S

    if mxu_dtype is None:
        # bf16 feed for f32 inputs: ~2x MXU rate, half the HBM bytes for x / w.
        mxu_dtype = jnp.bfloat16 if x.dtype == jnp.float32 else x.dtype
    if out_dtype is None:
        out_dtype = x.dtype
    feed_dtype = jnp.dtype(mxu_dtype)

    # NOTE: in a real model the upstream producer should emit x in `feed_dtype`
    # directly (or XLA fuses this cast into it); the pallas_call below then
    # reads x from HBM at feed width.
    x2 = x.reshape(M, D).astype(feed_dtype)
    w2 = w.astype(feed_dtype)
    b2 = b.reshape(1, D).astype(jnp.float32)

    fbytes = feed_dtype.itemsize
    obytes = jnp.dtype(out_dtype).itemsize
    wbytes = fbytes

    # Conservative per-core VMEM budget: fits the v5e 16 MiB and v7x 32 MiB
    # scoped defaults without a vmem_limit_bytes override.
    VMEM_BUDGET = 14 * 1024 * 1024
    W_RESIDENT_BUDGET = 6 * 1024 * 1024   # single-buffered full (D, D) weight

    # ---- output-column tile (N axis) ----
    lane_dense = (D % 128 == 0)
    if block_n is not None:
        bn = min(block_n, D)
        if bn != D:
            bn = max(128, (bn // 128) * 128)
    elif (not lane_dense) or (D * D * wbytes <= W_RESIDENT_BUDGET):
        bn = D                              # full-width: weight stays resident
    else:
        # Streamed (double-buffered) weight column strips.
        bn = max(128, min(D, (W_RESIDENT_BUDGET // (2 * D * wbytes)) // 128 * 128))
    ntile = bn < D

    # ---- token tile (M axis) ----
    def _vmem_est(bm):
        w_copies = 2 if ntile else 1        # Buffered(1) when index is constant
        tot = w_copies * D * bn * wbytes + w_copies * bn * 4       # weight + bias
        tot += 2 * bm * D * fbytes                                 # x strip (x2)
        tot += 2 * bm * bn * obytes                                # out tile (x2)
        if ntile:
            tot += 2 * bm * bn * fbytes                            # residual slab
        return tot

    bm = _round_up(min(block_m, max(M, 8)), 8)
    while bm > 8 and _vmem_est(bm) > VMEM_BUDGET:
        bm = _round_up(bm // 2, 8)
    # Give both v7x TensorCores work on the "parallel" M axis when possible.
    if M > 8 and pl.cdiv(M, bm) < 2:
        bm = _round_up(pl.cdiv(M, 2), 8)

    if not ntile:
        grid = (pl.cdiv(M, bm),)
        out = pl.pallas_call(
            _residual_dense_kernel,
            out_shape=jax.ShapeDtypeStruct((M, D), out_dtype),
            grid=grid,
            in_specs=[
                # x tile, pipelined (double-buffered) over M.
                pl.BlockSpec((bm, D), lambda i: (i, 0)),
                # Constant-index weight / bias: fetched once, single-buffered.
                pl.BlockSpec((D, D), lambda i: (0, 0),
                             pipeline_mode=pl.Buffered(1)),
                pl.BlockSpec((1, D), lambda i: (0, 0),
                             pipeline_mode=pl.Buffered(1)),
            ],
            out_specs=pl.BlockSpec((bm, D), lambda i: (i, 0)),
            compiler_params=pltpu.CompilerParams(
                dimension_semantics=("parallel",)),
        )(x2, w2, b2)
    else:
        # Wide layers: stream weight column strips (outer axis) so the per-step
        # weight slice stays bounded; x row strips are the matmul operand and
        # a (bm, bn) residual slab is fetched per output tile.
        grid = (pl.cdiv(D, bn), pl.cdiv(M, bm))     # (n outer, m inner)
        out = pl.pallas_call(
            _residual_dense_ntile_kernel,
            out_shape=jax.ShapeDtypeStruct((M, D), out_dtype),
            grid=grid,
            in_specs=[
                pl.BlockSpec((bm, D), lambda j, i: (i, 0)),    # x strip (K dim)
                pl.BlockSpec((bm, bn), lambda j, i: (i, j)),   # residual slab
                pl.BlockSpec((D, bn), lambda j, i: (0, j)),    # weight col strip
                pl.BlockSpec((1, bn), lambda j, i: (0, j)),    # bias slice
            ],
            out_specs=pl.BlockSpec((bm, bn), lambda j, i: (i, j)),
            compiler_params=pltpu.CompilerParams(
                dimension_semantics=("parallel", "parallel")),
        )(x2, x2, w2, b2)

    return out.reshape(B, S, D)


if __name__ == "__main__":
    key = jax.random.PRNGKey(0)
    kx, kw, kb, kx2, kw2, kb2 = jax.random.split(key, 6)

    # --- Small shape implied by the module (hidden=32, kept unpadded). -----
    B, S, D = 2, 8, 32
    x = jax.random.normal(kx, (B, S, D), dtype=jnp.float32)
    w = jax.random.normal(kw, (D, D), dtype=jnp.float32) * 0.02
    b = jax.random.normal(kb, (D,), dtype=jnp.float32) * 0.02

    # Default path: bf16 MXU feed + bf16 x read, f32 accumulate / epilogue.
    out = residual_dense(x, w, b)
    jax.block_until_ready(out)
    assert out.shape == (B, S, D) and out.dtype == x.dtype
    xb = x.astype(jnp.bfloat16).astype(jnp.float32)
    wb = w.astype(jnp.bfloat16).astype(jnp.float32)
    ref_bf16 = jnp.einsum("bsd,de->bse", xb, wb) + b + xb
    assert jnp.allclose(out, ref_bf16, atol=2e-2, rtol=2e-2)

    # Exact f32-fed path (residual term is exact f32 x).
    out_f32 = residual_dense(x, w, b, mxu_dtype=jnp.float32)
    jax.block_until_ready(out_f32)
    ref_f32 = jnp.einsum("bsd,de->bse", x, w) + b + x
    assert jnp.allclose(out_f32, ref_f32, atol=1e-4, rtol=1e-4)

    # --- N-tiled (streamed weight) path + partial M tail tile. -------------
    # Small shape, but block_n forced below D to exercise the wide-layer path:
    # grid = (D/bn, cdiv(M, bm)) with a masked tail tile on M.
    B2, S2, D2 = 2, 76, 256                    # M = 152
    x_l = jax.random.normal(kx2, (B2, S2, D2), dtype=jnp.float32)
    w_l = jax.random.normal(kw2, (D2, D2), dtype=jnp.float32) * 0.02
    b_l = jax.random.normal(kb2, (D2,), dtype=jnp.float32) * 0.02
    out_l = residual_dense(x_l, w_l, b_l, block_n=128)
    jax.block_until_ready(out_l)
    xlb = x_l.astype(jnp.bfloat16).astype(jnp.float32)
    wlb = w_l.astype(jnp.bfloat16).astype(jnp.float32)
    ref_l = jnp.einsum("bsd,de->bse", xlb, wlb) + b_l + xlb
    assert jnp.allclose(out_l, ref_l, atol=2e-2, rtol=2e-2)

    # TODO(synk): Residual wraps an arbitrary fn; only the Linear instantiation
    # is fused here — other wrapped fns (attention / MLP stacks) need their own
    # kernels.
    print("KERNEL_OK")
</pallas_src>

<mosaic_0001>
module attributes {stable_mosaic.version = 11 : i64} {
  func.func @_residual_dense_kernel(%arg0: i32, %arg1: memref<8x32xbf16, #tpu.memory_space<vmem>>, %arg2: memref<32x32xbf16, #tpu.memory_space<vmem>>, %arg3: memref<1x32xf32, #tpu.memory_space<vmem>>, %arg4: memref<8x32xf32, #tpu.memory_space<vmem>>) attributes {dimension_semantics = [#tpu.dimension_semantics<parallel>], iteration_bounds = array<i64: 2>, scalar_prefetch = 0 : i64, scratch_operands = 0 : i64, tpu.core_type = #tpu.core_type<tc>, window_params = [{transform_indices = @transform_0, window_bounds = array<i64: 8, 32>}, {pipeline_mode = #tpu.pipeline_mode<synchronous>, transform_indices = @transform_1, window_bounds = array<i64: 32, 32>}, {pipeline_mode = #tpu.pipeline_mode<synchronous>, transform_indices = @transform_2, window_bounds = array<i64: 1, 32>}, {transform_indices = @transform_3, window_bounds = array<i64: 8, 32>}]} {
    %c0 = arith.constant 0 : index
    %c0_0 = arith.constant 0 : index
    %0 = vector.load %arg1[%c0, %c0_0] : memref<8x32xbf16, #tpu.memory_space<vmem>>, vector<8x32xbf16>
    %c0_1 = arith.constant 0 : index
    %c0_2 = arith.constant 0 : index
    %1 = vector.load %arg2[%c0_1, %c0_2] : memref<32x32xbf16, #tpu.memory_space<vmem>>, vector<32x32xbf16>
    %cst = arith.constant dense<0.000000e+00> : vector<8x32xf32>
    %2 = tpu.matmul %0, %1, %cst {dimension_numbers = #tpu.dot_dimension_numbers<[1], [0], [0], [1], [0, 0, 1, 1], [], []>} : vector<8x32xbf16>, vector<32x32xbf16>, vector<8x32xf32> -> vector<8x32xf32>
    %c0_3 = arith.constant 0 : index
    %c0_4 = arith.constant 0 : index
    %3 = vector.load %arg3[%c0_3, %c0_4] : memref<1x32xf32, #tpu.memory_space<vmem>>, vector<1x32xf32>
    %4 = vector.broadcast %3 : vector<1x32xf32> to vector<8x32xf32>
    %5 = arith.addf %2, %4 : vector<8x32xf32>
    %6 = arith.extf %0 : vector<8x32xbf16> to vector<8x32xf32>
    %7 = arith.addf %5, %6 : vector<8x32xf32>
    %c0_5 = arith.constant 0 : index
    %c0_6 = arith.constant 0 : index
    %8 = vector.load %arg4[%c0_5, %c0_6] : memref<8x32xf32, #tpu.memory_space<vmem>>, vector<8x32xf32>
    tpu.vector_store %arg4[%c0_5, %c0_6], %7 {strides = array<i32>} : memref<8x32xf32, #tpu.memory_space<vmem>>, vector<8x32xf32>,
    return
  }
  func.func @transform_0(%arg0: i32) -> (i32, i32) {
    %c0_i32 = arith.constant 0 : i32
    %c0_i32_0 = arith.constant 0 : i32
    return %arg0, %c0_i32 : i32, i32
  }
  func.func @transform_1(%arg0: i32) -> (i32, i32) {
    %c0_i32 = arith.constant 0 : i32
    %c0_i32_0 = arith.constant 0 : i32
    %c0_i32_1 = arith.constant 0 : i32
    return %c0_i32, %c0_i32_0 : i32, i32
  }
  func.func @transform_2(%arg0: i32) -> (i32, i32) {
    %c0_i32 = arith.constant 0 : i32
    %c0_i32_0 = arith.constant 0 : i32
    %c0_i32_1 = arith.constant 0 : i32
    return %c0_i32, %c0_i32_0 : i32, i32
  }
  func.func @transform_3(%arg0: i32) -> (i32, i32) {
    %c0_i32 = arith.constant 0 : i32
    %c0_i32_0 = arith.constant 0 : i32
    return %arg0, %c0_i32 : i32, i32
  }
}

</mosaic_0001>

<llo_original>
// kernel: tpu_custom_call.1
$region0: #{tpu_custom_call.1}
  #allocation0 [shape = 'u32[]', space=smem, size = 0x4, offset = 0x4, fixed_abs, tag = 'smem constant byte address 0x4 - core index']
  #allocation1 [shape = 'u32[144,128]{1,0:T(1,128)}', space=vmem, size = 0x12000, scoped, tag = 'internal scratch']
  %s0 = inlined_call_operand.hbm [shape: bf16[16,32], index: 0, kind: input, shape index: {}]
  %s1 = inlined_call_operand.hbm [shape: bf16[32,32], index: 1, kind: input, shape index: {}]
  %s2 = inlined_call_operand.vmem [shape: f32[1,32], index: 2, kind: input, shape index: {}]
  %s3 = inlined_call_operand.hbm [shape: f32[16,32], index: 3, kind: output, shape index: {}]
  %s4 = sld [smem:[#allocation0]]
  $region53: #{tpu_custom_call.1} parent=0
    _
  %s6 = ssub.s32 1, %s4
  %s7 = scalar_select 0, %s6, %s4
  $region1: #{tpu_custom_call.1} parent=0
    #allocation2 [shape = 'u8[4096]{0}', space=vmem, size = 0x1000, scoped, tag = 'input window, operand 0']
    #allocation3 [shape = 's32[2]{0}', space=sflag, size = 0x8, scoped, tag = 'scoped memory for tpu_custom_call.1']
    #allocation4 [shape = 's32[2]{0}', space=sflag, size = 0x8, scoped, tag = 'scoped memory for tpu_custom_call.1']
    #allocation5 [shape = 'u8[8192]{0}', space=vmem, size = 0x2000, scoped, tag = 'input window, operand 1, single buffered']
    #allocation6 [shape = 's32[1]{0}', space=sflag, size = 0x4, scoped, tag = 'scoped memory for tpu_custom_call.1']
    #allocation7 [shape = 'u8[8192]{0}', space=vmem, size = 0x2000, scoped, tag = 'output window, operand 0']
    %8 = vsyncpa [#allocation3], 0
    %s9 = scalar_lea.sflag [#allocation3], 1
    %10 = vsyncpa %s9, 0
    %11 = vsyncpa [#allocation6], 0
    %12 = vsyncpa [#allocation4], 0
    %s13 = scalar_lea.sflag [#allocation4], 1
    %14 = vsyncpa %s13, 0
    loop: start=0, step=1, limit=4
    $region2: #{tpu_custom_call.1} parent=1 // loop_pre_header
      _
    $region3: #{tpu_custom_call.1} parent=1 // loop_header
      %s16 = sphi 0, %s20
      %p17 = scmp.ge.s32.totalorder %s16, 4
      %s26 = sphi 0, %s28
      %s29 = sphi 0, %s26
      %s30 = sphi 0, %s29
      %s46 = sphi 0, %s30
      %s50 = sphi 0, %s50
      %s52 = sphi 0, %s50
      %s53 = sphi 0, %s52
      %s67 = sphi 0, %s53
      %s71 = sphi 0, %s71
      %s73 = sphi 0, %s71
      %s74 = sphi 0, %s73
      %s88 = sphi 0, %s74
      %s94 = sphi 0, %s96
      %s97 = sphi 0, %s94
      %s98 = sphi 0, %s97
      %s114 = sphi 0, %s98
    $region4: #{tpu_custom_call.1} parent=1 // loop_header_branch
      %19 = sbr.rel (%p17) target = $region8
    $region5: #{tpu_custom_call.1} parent=1 // loop_body
      %s21 = ssub.s32 %s16, 1
      %s22 = ssub.s32 %s16, 2
      %s23 = sadd.s32 %s16, 1
      %s24 = ssub.s32 %s16, %s23
      %p25 = scmp.eq.s32.totalorder %s24, 0
      %s27 = sadd.s32 %s26, 1
      %s28 = scalar_select %p25, %s26, %s27
      %p31 = pneg %p25
      %p32 = scmp.eq.s32.totalorder %s16, 1
      %p33 = por %p31, %p32
      %p34 = scmp.ne.s32.totalorder %s26, %s29
      %p35 = scmp.eq.s32.totalorder %s16, 0
      %p36 = por %p34, %p35
      %p37 = scmp.ne.s32.totalorder %s26, %s29
      %p38 = scmp.eq.s32.totalorder %s21, 1
      %p39 = por %p37, %p38
      %p40 = scmp.ne.s32.totalorder %s29, %s30
      %p41 = scmp.eq.s32.totalorder %s21, 0
      %p42 = por %p40, %p41
      %p43 = scmp.ne.s32.totalorder %s29, %s30
      %p44 = scmp.eq.s32.totalorder %s22, 1
      %p45 = por %p43, %p44
      %p47 = scmp.ne.s32.totalorder %s30, %s46
      %p48 = scmp.eq.s32.totalorder %s22, 0
      %p49 = por %p47, %p48
      %s51 = sadd.s32 %s50, 1
      %p54 = scmp.eq.s32.totalorder %s16, 1
      %p55 = scmp.ne.s32.totalorder %s50, %s52
      %p56 = scmp.eq.s32.totalorder %s16, 0
      %p57 = por %p55, %p56
      %p58 = scmp.ne.s32.totalorder %s50, %s52
      %p59 = scmp.eq.s32.totalorder %s21, 1
      %p60 = por %p58, %p59
      %p61 = scmp.ne.s32.totalorder %s52, %s53
      %p62 = scmp.eq.s32.totalorder %s21, 0
      %p63 = por %p61, %p62
      %p64 = scmp.ne.s32.totalorder %s52, %s53
      %p65 = scmp.eq.s32.totalorder %s22, 1
      %p66 = por %p64, %p65
      %p68 = scmp.ne.s32.totalorder %s53, %s67
      %p69 = scmp.eq.s32.totalorder %s22, 0
      %p70 = por %p68, %p69
      %s72 = sadd.s32 %s71, 1
      %p75 = scmp.eq.s32.totalorder %s16, 1
      %p76 = scmp.ne.s32.totalorder %s71, %s73
      %p77 = scmp.eq.s32.totalorder %s16, 0
      %p78 = por %p76, %p77
      %p79 = scmp.ne.s32.totalorder %s71, %s73
      %p80 = scmp.eq.s32.totalorder %s21, 1
      %p81 = por %p79, %p80
      %p82 = scmp.ne.s32.totalorder %s73, %s74
      %p83 = scmp.eq.s32.totalorder %s21, 0
      %p84 = por %p82, %p83
      %p85 = scmp.ne.s32.totalorder %s73, %s74
      %p86 = scmp.eq.s32.totalorder %s22, 1
      %p87 = por %p85, %p86
      %p89 = scmp.ne.s32.totalorder %s74, %s88
      %p90 = scmp.eq.s32.totalorder %s22, 0
      %p91 = por %p89, %p90
      %s92 = ssub.s32 %s16, %s23
      %p93 = scmp.eq.s32.totalorder %s92, 0
      %s95 = sadd.s32 %s94, 1
      %s96 = scalar_select %p93, %s94, %s95
      %p99 = pneg %p93
      %p100 = scmp.eq.s32.totalorder %s16, 1
      %p101 = por %p99, %p100
      %p102 = scmp.ne.s32.totalorder %s94, %s97
      %p103 = scmp.eq.s32.totalorder %s16, 0
      %p104 = por %p102, %p103
      %p105 = scmp.ne.s32.totalorder %s94, %s97
      %p106 = scmp.eq.s32.totalorder %s21, 1
      %p107 = por %p105, %p106
      %p108 = scmp.ne.s32.totalorder %s97, %s98
      %p109 = scmp.eq.s32.totalorder %s21, 0
      %p110 = por %p108, %p109
      %p111 = scmp.ne.s32.totalorder %s97, %s98
      %p112 = scmp.eq.s32.totalorder %s22, 1
      %p113 = por %p111, %p112
      %p115 = scmp.ne.s32.totalorder %s98, %s114
      %p116 = scmp.eq.s32.totalorder %s22, 0
      %p117 = por %p115, %p116
      %p118 = scmp.le.s32.totalorder 1, %s16
      %p119 = scmp.lt.s32.totalorder %s16, 3
      %p120 = pnand %p118, %p119
      %p121 = pneg %p120
      // Predicated region
      $region9: #{tpu_custom_call.1} parent=5 // pred_check
        _
      $region10: #{tpu_custom_call.1} parent=5 // pred_check_branch
        %123 = sbr.rel (%p120) target = $region12
      $region11: #{tpu_custom_call.1} parent=5 // pred_region
        %s124 = ssub.s32 %s16, 1
        // Predicated region
        $region13: #{tpu_custom_call.1} parent=11 // pred_check
          %p125 = pneg %p63
        $region14: #{tpu_custom_call.1} parent=11 // pred_check_branch
          %127 = sbr.rel (%p125) target = $region16
        $region15: #{tpu_custom_call.1} parent=11 // pred_region
          %s129 = ssub.s32 256, 256
          %130 = vsyncadd [#allocation6], %s129
          %s131 = sshll.u32 [#allocation5], 4
          %s132 = int_to_ptr.vmem [resolvable:$true] %s131
          %137 = dma.hbm_to_vmem [thread:$0]  %s1, 256, %s132, [#allocation6], 64, 64, 4
        $region16: #{tpu_custom_call.1} parent=11 // pred_fallthru
          _
        // Predicated region
        $region17: #{tpu_custom_call.1} parent=11 // pred_check
          %p138 = pneg %p84
        $region18: #{tpu_custom_call.1} parent=11 // pred_check_branch
          %140 = sbr.rel (%p138) target = $region20
        $region19: #{tpu_custom_call.1} parent=11 // pred_region
          _
        $region20: #{tpu_custom_call.1} parent=11 // pred_fallthru
          _
      $region12: #{tpu_custom_call.1} parent=5 // pred_fallthru
        _
      %p141 = scmp.lt.s32.totalorder %s16, 2
      // Predicated region
      $region21: #{tpu_custom_call.1} parent=5 // pred_check
        %p142 = pneg %p141
      $region22: #{tpu_custom_call.1} parent=5 // pred_check_branch
        %144 = sbr.rel (%p142) target = $region24
      $region23: #{tpu_custom_call.1} parent=5 // pred_region
        // Predicated region
        $region25: #{tpu_custom_call.1} parent=23 // pred_check
          %p145 = pneg %p36
        $region26: #{tpu_custom_call.1} parent=23 // pred_check_branch
          %147 = sbr.rel (%p145) target = $region28
        $region27: #{tpu_custom_call.1} parent=23 // pred_region
          %s148 = sand.u32 %s26, 1
          %s149 = scalar_lea.sflag [#allocation3], %s148
          %s150 = sand.u32 %s26, 1
          %s151 = smul.addr %s150, 4
          %s152 = scalar_lea.vmem [#allocation2], %s151
          %s154 = ssub.s32 64, 64
          %155 = vsyncadd %s149, %s154
          %s156 = smul.addr %s16, 64
          %s157 = scalar_lea.hbm %s0, %s156
          %s159 = sshll.u32 %s152, 4
          %s160 = int_to_ptr.vmem [resolvable:$true] %s159
          %162 = dma.hbm_to_vmem [thread:$0]  %s157, 64, %s160, %s149
        $region28: #{tpu_custom_call.1} parent=23 // pred_fallthru
          _
      $region24: #{tpu_custom_call.1} parent=5 // pred_fallthru
        _
      %p163 = scmp.le.s32.totalorder 1, %s16
      %p164 = scmp.lt.s32.totalorder %s16, 3
      %p165 = pnand %p163, %p164
      %p166 = pneg %p165
      // Predicated region
      $region29: #{tpu_custom_call.1} parent=5 // pred_check
        _
      $region30: #{tpu_custom_call.1} parent=5 // pred_check_branch
        %168 = sbr.rel (%p165) target = $region32
      $region31: #{tpu_custom_call.1} parent=5 // pred_region
        %s169 = ssub.s32 %s16, 1
        %s170 = sand.u32 %s29, 1
        %s171 = scalar_lea.sflag [#allocation3], %s170
        %s172 = sand.u32 %s29, 1
        %s173 = smul.addr %s172, 4
        %s174 = scalar_lea.vmem [#allocation2], %s173
        // Predicated region
        $region33: #{tpu_custom_call.1} parent=31 // pred_check
          %p175 = pneg %p42
        $region34: #{tpu_custom_call.1} parent=31 // pred_check_branch
          %177 = sbr.rel (%p175) target = $region36
        $region35: #{tpu_custom_call.1} parent=31 // pred_region
          %178 = dma.done %s171, 64
        $region36: #{tpu_custom_call.1} parent=31 // pred_fallthru
          _
        // Predicated region
        $region37: #{tpu_custom_call.1} parent=31 // pred_check
          %p179 = pneg %p63
        $region38: #{tpu_custom_call.1} parent=31 // pred_check_branch
          %181 = sbr.rel (%p179) target = $region40
        $region39: #{tpu_custom_call.1} parent=31 // pred_region
          %182 = dma.done [#allocation6], 256
        $region40: #{tpu_custom_call.1} parent=31 // pred_fallthru
          _
        %s183 = sand.u32 %s29, 1
        %s184 = scalar_lea.sflag [#allocation3], %s183
        %s185 = sand.u32 %s29, 1
        %s186 = smul.addr %s185, 4
        %s187 = scalar_lea.vmem [#allocation2], %s186
        %p188 = pneg %p42
        %p189 = pneg %p39
        %p190 = pneg %p63
        %p191 = pneg %p60
        %p192 = pneg %p84
        %p193 = pneg %p81
        %p194 = pneg %p110
        %p195 = pneg %p107
        %s196 = sand.u32 %s97, 1
        %s197 = scalar_lea.sflag [#allocation4], %s196
        %s198 = sand.u32 %s97, 1
        %s199 = smul.addr %s198, 8
        %s200 = scalar_lea.vmem [#allocation7], %s199
        %v202 = vld [vmem:[%s174] sm:$0xf]
        %v203 = vld [vmem:[#allocation5] sm:$0xf]
        %v204 = vld [vmem:[#allocation5 + $0x4] sm:$0xf]
        %v205 = vld [vmem:[#allocation5 + $0x8] sm:$0xf]
        %v206 = vld [vmem:[#allocation5 + $0xc] sm:$0xf]
        %v207 = vld [vmem:[%s2] sm:$0x1]
        %v209 = vlaneseq
        %v210 = vshrl.u32 %v209, 7
        %v211 = vsub.s32 0, %v210
        %v212 = vrot.slane %v207, %v211
        %v218 = vunpack.c.l.b16 %v203
        %v219 = vunpack.c.l.b16 %v204
        %v220 = vunpack.c.l.b16 %v205
        %v221 = vunpack.c.l.b16 %v206
        %v222 = vpack.c.b16 %v219, %v218
        %v223 = vpack.c.b16 %v221, %v220
        %vm226 = vcmask 261120
        %v228 = vsel %vm226, %v202, 0
        %230 = vmatprep.subr.bf16.mxu0 0
        %231 = vmatpush1.bf16.msra.mxu0 %v222
        %232 = vmatprep.subr.bf16.mxu0 0
        %233 = vmatpush1.bf16.msra.mxu0 %v223
        %234 = vmatprep.subr.bf16.mxu0 0
        %235 = vmatpush1.bf16.msra.mxu0 0
        %236 = vmatprep.subr.bf16.mxu0 0
        %237 = vmatpush1.bf16.msra.mxu0 0
        %238 = vmatprep.subr.bf16.mxu0 0
        %239 = vmatpush1.bf16.msra.mxu0 0
        %240 = vmatprep.subr.bf16.mxu0 0
        %241 = vmatpush1.bf16.msra.mxu0 0
        %242 = vmatprep.subr.bf16.mxu0 0
        %243 = vmatpush1.bf16.msra.mxu0 0
        %244 = vmatprep.subr.bf16.mxu0 0
        %245 = vmatpush1.bf16.msra.mxu0 0
        %246 = vmatprep.subr.bf16.mxu0 0
        %247 = vmatpush1.bf16.msra.mxu0 0
        %248 = vmatprep.subr.bf16.mxu0 0
        %249 = vmatpush1.bf16.msra.mxu0 0
        %250 = vmatprep.subr.bf16.mxu0 0
        %251 = vmatpush1.bf16.msra.mxu0 0
        %252 = vmatprep.subr.bf16.mxu0 0
        %253 = vmatpush1.bf16.msra.mxu0 0
        %254 = vmatprep.subr.bf16.mxu0 0
        %255 = vmatpush1.bf16.msra.mxu0 0
        %256 = vmatprep.subr.bf16.mxu0 0
        %257 = vmatpush1.bf16.msra.mxu0 0
        %258 = vmatprep.subr.bf16.mxu0 0
        %259 = vmatpush1.bf16.msra.mxu0 0
        %260 = vmatprep.subr.bf16.mxu0 0
        %261 = vmatpush1.bf16.msra.mxu0 0
        %262 = vmatprep.mubr.bf16.mxu0 0
        %263 = vmatmul.mubr.bf16.gmra.mrb[0].mxu0 %v228
        %v264 = vpop.f32.mrb[0].mxu0
        %v265 = vadd.f32 %v212, %v264
        %v266 = vpop.f32.mrb[0].mxu0
        %v267 = vpop.f32.mrb[0].mxu0
        %v268 = vpop.f32.mrb[0].mxu0
        %269 = vdwg.mxu0
        %v270 = vunpack.c.l.bf16 %v202
        %v271 = vadd.f32 %v265, %v270
        %272 = vst.msk [vmem:[%s200] sm:$0xff] %vm226, %v271
        %s273 = sand.u32 %s97, 1
        %s274 = scalar_lea.sflag [#allocation4], %s273
        %s275 = sand.u32 %s97, 1
        %s276 = smul.addr %s275, 8
        %s277 = scalar_lea.vmem [#allocation7], %s276
        // Predicated region
        $region41: #{tpu_custom_call.1} parent=31 // pred_check
          %p278 = pneg %p107
        $region42: #{tpu_custom_call.1} parent=31 // pred_check_branch
          %280 = sbr.rel (%p278) target = $region44
        $region43: #{tpu_custom_call.1} parent=31 // pred_region
          %s282 = ssub.s32 128, 128
          %283 = vsyncadd %s274, %s282
          %s284 = smul.addr %s21, 128
          %s285 = scalar_lea.hbm %s3, %s284
          %s287 = sshll.u32 %s277, 4
          %s288 = int_to_ptr.vmem [resolvable:$true] %s287
          %290 = dma.vmem_to_hbm [thread:$0]  %s288, 128, %s285, %s274
        $region44: #{tpu_custom_call.1} parent=31 // pred_fallthru
          _
      $region32: #{tpu_custom_call.1} parent=5 // pred_fallthru
        _
      %p291 = scmp.le.s32.totalorder 2, %s16
      // Predicated region
      $region45: #{tpu_custom_call.1} parent=5 // pred_check
        %p292 = pneg %p291
      $region46: #{tpu_custom_call.1} parent=5 // pred_check_branch
        %294 = sbr.rel (%p292) target = $region48
      $region47: #{tpu_custom_call.1} parent=5 // pred_region
        %s295 = ssub.s32 %s16, 2
        // Predicated region
        $region49: #{tpu_custom_call.1} parent=47 // pred_check
          %p296 = pneg %p113
        $region50: #{tpu_custom_call.1} parent=47 // pred_check_branch
          %298 = sbr.rel (%p296) target = $region52
        $region51: #{tpu_custom_call.1} parent=47 // pred_region
          %s299 = sand.u32 %s98, 1
          %s300 = scalar_lea.sflag [#allocation4], %s299
          %s301 = sand.u32 %s98, 1
          %s302 = smul.addr %s301, 8
          %s303 = scalar_lea.vmem [#allocation7], %s302
          %304 = dma.done %s300, 128
        $region52: #{tpu_custom_call.1} parent=47 // pred_fallthru
          _
      $region48: #{tpu_custom_call.1} parent=5 // pred_fallthru
        _
    $region6: #{tpu_custom_call.1} parent=1 // loop_footer
      %s20 = sadd.s32 1, %s16
    $region7: #{tpu_custom_call.1} parent=1 // loop_footer_branch
      %15 = sbr.rel target = $region3
    $region8: #{tpu_custom_call.1} parent=1 // loop_exit
      _
    %305 = vsyncpa [#allocation3], 1
    %s306 = scalar_lea.sflag [#allocation3], 1
    %307 = vsyncpa %s306, 1
    %308 = vsyncpa [#allocation6], 1
    %309 = vsyncpa [#allocation4], 1
    %s310 = scalar_lea.sflag [#allocation4], 1
    %311 = vsyncpa %s310, 1

</llo_original>
